<compile_context>
chip_gen: v7x
topology: tpu7x:2x2x1
jax: 0.10.0
libtpu: 0.0.40
codegen_flags: <defaults>
</compile_context>

<pallas_src>
import functools

import jax
import jax.numpy as jnp
from jax.experimental import pallas as pl
from jax.experimental.pallas import tpu as pltpu


def _round_up(v, m):
    return ((v + m - 1) // m) * m


def _default_compute_dtype():
    """bf16 hidden-layer math on v6e/v7x (native bf16 VALU); f32 elsewhere."""
    try:
        kind = jax.devices()[0].device_kind.lower()
    except Exception:  # no devices visible at trace time -> safe fallback
        return jnp.float32
    if any(tag in kind for tag in ("v6", "v7", "7x")):
        return jnp.bfloat16
    return jnp.float32  # v5e (and older / unknown): no bf16 VPU -> stay f32


def _mlp_kernel(params_ref, xT_ref, o_ref, *, F, H1, H2, O):
    """One batch tile: all three layers fused, pure-VPU FMAs (no MXU).

    params_ref : (R, 23) packed parameters (single DMA, VMEM-resident).
    xT_ref     : (F, TB) input tile, batch on the 128-lane axis.
    o_ref      : (O, TB) f32 logits tile (lane-dense store along batch).
    """
    xT = xT_ref[...]          # (F, TB), f32 or bf16
    p = params_ref[...]       # (R, 23) -- one tiny load, sliced statically

    c = 0
    w1 = p[:H1, c:c + F]      # (H1, F)
    c += F
    b1 = p[:H1, c:c + 1]      # (H1, 1)
    c += 1
    w2 = p[:H2, c:c + H1]     # (H2, H1)
    c += H1
    b2 = p[:H2, c:c + 1]      # (H2, 1)
    c += 1
    w3 = p[:O, c:c + H2]      # (O, H2)
    c += H2
    b3 = p[:O, c:c + 1]       # (O, 1)

    TB = xT.shape[1]

    def affine_T(w, b, a, acc_dtype):
        # y = W @ a + b   with  W: (out, in), a: (in, TB), b: (out, 1)
        out_rows, in_cols = w.shape
        # Bias added once per tile (single lane-broadcast), in the acc dtype.
        acc = jnp.broadcast_to(b, (out_rows, TB)).astype(acc_dtype)
        # Unrolled VPU FMAs over the tiny contraction dim (4 / 8 / 8).
        for k in range(in_cols):
            acc = acc + w[:, k:k + 1] * a[k:k + 1, :]
        return acc

    cdt = xT.dtype  # compute dtype for the hidden layers (f32 or bf16)
    h1 = jnp.maximum(affine_T(w1, b1, xT, cdt), 0.0)
    h2 = jnp.maximum(affine_T(w2, b2, h1, cdt), 0.0)
    # Final logits accumulate in f32 regardless of the hidden compute dtype.
    y = affine_T(w3, b3, h2, jnp.float32)

    o_ref[...] = y.astype(o_ref.dtype)


def pack_params(w1, b1, w2, b2, w3, b3, dtype=jnp.float32):
    """Pack PyTorch-layout params (w: (out,in), b: (out,)) into one buffer.

    Layout (R = max(H1, H2, O) rows):
        [ W1 (R,F) | b1 (R,1) | W2 (R,H1) | b2 (R,1) | W3 (R,H2) | b3 (R,1) ]
    Rows beyond each tensor's true height are zero padding.
    """
    H1 = w1.shape[0]
    H2 = w2.shape[0]
    O = w3.shape[0]
    R = max(H1, H2, O)

    def padr(m):
        return jnp.pad(m, ((0, R - m.shape[0]), (0, 0)))

    packed = jnp.concatenate(
        [
            padr(w1), padr(b1[:, None]),
            padr(w2), padr(b2[:, None]),
            padr(w3), padr(b3[:, None]),
        ],
        axis=1,
    )
    return packed.astype(dtype)


def _pick_tb(B, tb):
    """Batch tile (lane axis). Always a multiple of 128."""
    if tb is not None:
        return max(128, _round_up(tb, 128))
    tb = min(32768, _round_up(B, 128))
    if B > 8192:
        # Ensure >= 2 grid steps so v7x's two TensorCores both get work.
        tb = min(tb, _round_up((B + 1) // 2, 128))
    return tb


def _run_mlp_T(xT, packed, *, H1, H2, O, tb):
    """Core pallas_call. xT: (F, Bp) with Bp a multiple of tb. Returns (O, Bp) f32."""
    F, Bp = xT.shape
    R, PC = packed.shape
    assert Bp % tb == 0 and tb % 128 == 0

    kernel = functools.partial(_mlp_kernel, F=F, H1=H1, H2=H2, O=O)

    return pl.pallas_call(
        kernel,
        out_shape=jax.ShapeDtypeStruct((O, Bp), jnp.float32),
        grid=(Bp // tb,),
        in_specs=[
            # Packed params: constant block index -> stays VMEM-resident.
            pl.BlockSpec((R, PC), lambda i: (0, 0)),
            # Input tile: batch (lanes) swept by the grid.
            pl.BlockSpec((F, tb), lambda i: (0, i)),
        ],
        # Lane-dense output orientation (batch on lanes) -- keep as (O, tb).
        out_specs=pl.BlockSpec((O, tb), lambda i: (0, i)),
        compiler_params=pltpu.CompilerParams(
            dimension_semantics=("parallel",),  # batch axis shards over TCs
        ),
    )(packed, xT)


def mlp_forward_feature_major(xT, w1, b1, w2, b2, w3, b3, *, tb=None,
                              compute_dtype=None):
    """Fast path: input already feature-major (F, B); returns logits as (O, B).

    Avoids the wrapper-side transpose HBM pass entirely.
    """
    cd = _default_compute_dtype() if compute_dtype is None else compute_dtype
    F, B = xT.shape
    H1, H2, O = w1.shape[0], w2.shape[0], w3.shape[0]

    tb_ = _pick_tb(B, tb)
    Bp = _round_up(B, tb_)

    packed = pack_params(w1, b1, w2, b2, w3, b3, dtype=cd)
    xTp = xT.astype(cd)
    if Bp != B:
        xTp = jnp.pad(xTp, ((0, 0), (0, Bp - B)))

    yT = _run_mlp_T(xTp, packed, H1=H1, H2=H2, O=O, tb=tb_)
    return yT[:, :B]


def mlp_forward(x, w1, b1, w2, b2, w3, b3, *, tb=None, compute_dtype=None):
    """PyTorch-compatible forward: x (B, F) -> logits (B, O).

    Jit this together with the producer of `x` so the pad+transpose fuses into
    one pass; or use `mlp_forward_feature_major` to skip it entirely.
    """
    cd = _default_compute_dtype() if compute_dtype is None else compute_dtype
    B, F = x.shape
    H1, H2, O = w1.shape[0], w2.shape[0], w3.shape[0]

    tb_ = _pick_tb(B, tb)
    Bp = _round_up(B, tb_)

    packed = pack_params(w1, b1, w2, b2, w3, b3, dtype=cd)
    # Lay the batch on the 128-lane axis (x^T), zero-padded to a tile multiple.
    xT = jnp.pad(x.astype(cd), ((0, Bp - B), (0, 0))).T  # (F, Bp)

    yT = _run_mlp_T(xT, packed, H1=H1, H2=H2, O=O, tb=tb_)
    return yT.T[:B]  # (B, O), matching PyTorch output layout


def init_params(key, input_layer=4, h1=8, h2=8, output_layer=3):
    """Deterministic synthetic parameters in PyTorch nn.Linear layout."""
    ks = jax.random.split(key, 6)

    def uniform(k, shape, fan_in):
        bound = 1.0 / jnp.sqrt(fan_in)
        return jax.random.uniform(k, shape, jnp.float32, -bound, bound)

    w1 = uniform(ks[0], (h1, input_layer), input_layer)
    b1 = uniform(ks[1], (h1,), input_layer)
    w2 = uniform(ks[2], (h2, h1), h1)
    b2 = uniform(ks[3], (h2,), h1)
    w3 = uniform(ks[4], (output_layer, h2), h2)
    b3 = uniform(ks[5], (output_layer,), h2)
    return w1, b1, w2, b2, w3, b3


def reference_forward(x, w1, b1, w2, b2, w3, b3, quantize_dtype=None):
    """Pure-JAX reference. If quantize_dtype is given, inputs/params are routed
    through that dtype first (to validate the bf16 kernel path apples-to-apples)."""
    if quantize_dtype is not None:
        q = lambda a: a.astype(quantize_dtype).astype(jnp.float32)
        x, w1, b1, w2, b2, w3, b3 = (q(a) for a in (x, w1, b1, w2, b2, w3, b3))
    h1 = jnp.maximum(x @ w1.T + b1, 0.0)
    h2 = jnp.maximum(h1 @ w2.T + b2, 0.0)
    return h2 @ w3.T + b3


if __name__ == "__main__":
    key = jax.random.PRNGKey(0)
    k_x, k_p = jax.random.split(key)

    batch = 8
    x = jax.random.normal(k_x, (batch, 4), jnp.float32)  # Iris: 4 features
    params = init_params(k_p)

    cd = _default_compute_dtype()

    # PyTorch-layout path (B, F) -> (B, 3).
    fwd = jax.jit(mlp_forward)
    out = jax.block_until_ready(fwd(x, *params))
    assert out.shape == (batch, 3)

    # Feature-major fast path (F, B) -> (3, B) -- same kernel, no transposes.
    fwd_T = jax.jit(mlp_forward_feature_major)
    out_T = jax.block_until_ready(fwd_T(x.T, *params))
    assert out_T.shape == (3, batch)

    # Correctness check against a pure-JAX reference of the same math,
    # with tolerance matched to the compute dtype actually used.
    if cd == jnp.bfloat16:
        ref = reference_forward(x, *params, quantize_dtype=jnp.bfloat16)
        atol = rtol = 5e-2
    else:
        ref = reference_forward(x, *params)
        atol = rtol = 1e-5

    assert jnp.allclose(out, ref, atol=atol, rtol=rtol)
    assert jnp.allclose(out_T.T, ref, atol=atol, rtol=rtol)

    print("KERNEL_OK")
</pallas_src>

<mosaic_0001>
module attributes {stable_mosaic.version = 11 : i64} {
  func.func @_mlp_kernel(%arg0: i32, %arg1: memref<8x23xf32, #tpu.memory_space<vmem>>, %arg2: memref<4x128xf32, #tpu.memory_space<vmem>>, %arg3: memref<3x128xf32, #tpu.memory_space<vmem>>) attributes {dimension_semantics = [#tpu.dimension_semantics<parallel>], iteration_bounds = array<i64: 1>, scalar_prefetch = 0 : i64, scratch_operands = 0 : i64, tpu.core_type = #tpu.core_type<tc>, window_params = [{pipeline_mode = #tpu.pipeline_mode<synchronous>, transform_indices = @transform_0, window_bounds = array<i64: 8, 23>}, {transform_indices = @transform_1, window_bounds = array<i64: 4, 128>}, {transform_indices = @transform_2, window_bounds = array<i64: 3, 128>}]} {
    %c0 = arith.constant 0 : index
    %c0_0 = arith.constant 0 : index
    %0 = vector.load %arg2[%c0, %c0_0] : memref<4x128xf32, #tpu.memory_space<vmem>>, vector<4x128xf32>
    %c0_1 = arith.constant 0 : index
    %c0_2 = arith.constant 0 : index
    %1 = vector.load %arg1[%c0_1, %c0_2] : memref<8x23xf32, #tpu.memory_space<vmem>>, vector<8x23xf32>
    %2 = vector.extract_strided_slice %1 {offsets = [0, 0], sizes = [8, 4], strides = [1, 1]} : vector<8x23xf32> to vector<8x4xf32>
    %3 = vector.extract_strided_slice %1 {offsets = [0, 4], sizes = [8, 1], strides = [1, 1]} : vector<8x23xf32> to vector<8x1xf32>
    %4 = vector.extract_strided_slice %1 {offsets = [0, 5], sizes = [8, 8], strides = [1, 1]} : vector<8x23xf32> to vector<8x8xf32>
    %5 = vector.extract_strided_slice %1 {offsets = [0, 13], sizes = [8, 1], strides = [1, 1]} : vector<8x23xf32> to vector<8x1xf32>
    %6 = vector.extract_strided_slice %1 {offsets = [0, 14], sizes = [3, 8], strides = [1, 1]} : vector<8x23xf32> to vector<3x8xf32>
    %7 = vector.extract_strided_slice %1 {offsets = [0, 22], sizes = [3, 1], strides = [1, 1]} : vector<8x23xf32> to vector<3x1xf32>
    %8 = vector.shape_cast %3 : vector<8x1xf32> to vector<8x1xf32>
    %9 = vector.broadcast %8 : vector<8x1xf32> to vector<8x128xf32>
    %10 = vector.extract_strided_slice %2 {offsets = [0, 0], sizes = [8, 1], strides = [1, 1]} : vector<8x4xf32> to vector<8x1xf32>
    %11 = vector.extract_strided_slice %0 {offsets = [0, 0], sizes = [1, 128], strides = [1, 1]} : vector<4x128xf32> to vector<1x128xf32>
    %12 = vector.broadcast %10 : vector<8x1xf32> to vector<8x128xf32>
    %13 = vector.broadcast %11 : vector<1x128xf32> to vector<8x128xf32>
    %14 = arith.mulf %12, %13 : vector<8x128xf32>
    %15 = arith.addf %9, %14 : vector<8x128xf32>
    %16 = vector.extract_strided_slice %2 {offsets = [0, 1], sizes = [8, 1], strides = [1, 1]} : vector<8x4xf32> to vector<8x1xf32>
    %17 = vector.extract_strided_slice %0 {offsets = [1, 0], sizes = [1, 128], strides = [1, 1]} : vector<4x128xf32> to vector<1x128xf32>
    %18 = vector.broadcast %16 : vector<8x1xf32> to vector<8x128xf32>
    %19 = vector.broadcast %17 : vector<1x128xf32> to vector<8x128xf32>
    %20 = arith.mulf %18, %19 : vector<8x128xf32>
    %21 = arith.addf %15, %20 : vector<8x128xf32>
    %22 = vector.extract_strided_slice %2 {offsets = [0, 2], sizes = [8, 1], strides = [1, 1]} : vector<8x4xf32> to vector<8x1xf32>
    %23 = vector.extract_strided_slice %0 {offsets = [2, 0], sizes = [1, 128], strides = [1, 1]} : vector<4x128xf32> to vector<1x128xf32>
    %24 = vector.broadcast %22 : vector<8x1xf32> to vector<8x128xf32>
    %25 = vector.broadcast %23 : vector<1x128xf32> to vector<8x128xf32>
    %26 = arith.mulf %24, %25 : vector<8x128xf32>
    %27 = arith.addf %21, %26 : vector<8x128xf32>
    %28 = vector.extract_strided_slice %2 {offsets = [0, 3], sizes = [8, 1], strides = [1, 1]} : vector<8x4xf32> to vector<8x1xf32>
    %29 = vector.extract_strided_slice %0 {offsets = [3, 0], sizes = [1, 128], strides = [1, 1]} : vector<4x128xf32> to vector<1x128xf32>
    %30 = vector.broadcast %28 : vector<8x1xf32> to vector<8x128xf32>
    %31 = vector.broadcast %29 : vector<1x128xf32> to vector<8x128xf32>
    %32 = arith.mulf %30, %31 : vector<8x128xf32>
    %33 = arith.addf %27, %32 : vector<8x128xf32>
    %cst = arith.constant 0.000000e+00 : f32
    %34 = vector.broadcast %cst : f32 to vector<8x128xf32>
    %35 = arith.maximumf %33, %34 : vector<8x128xf32>
    %36 = vector.shape_cast %5 : vector<8x1xf32> to vector<8x1xf32>
    %37 = vector.broadcast %36 : vector<8x1xf32> to vector<8x128xf32>
    %38 = vector.extract_strided_slice %4 {offsets = [0, 0], sizes = [8, 1], strides = [1, 1]} : vector<8x8xf32> to vector<8x1xf32>
    %39 = vector.extract_strided_slice %35 {offsets = [0, 0], sizes = [1, 128], strides = [1, 1]} : vector<8x128xf32> to vector<1x128xf32>
    %40 = vector.broadcast %38 : vector<8x1xf32> to vector<8x128xf32>
    %41 = vector.broadcast %39 : vector<1x128xf32> to vector<8x128xf32>
    %42 = arith.mulf %40, %41 : vector<8x128xf32>
    %43 = arith.addf %37, %42 : vector<8x128xf32>
    %44 = vector.extract_strided_slice %4 {offsets = [0, 1], sizes = [8, 1], strides = [1, 1]} : vector<8x8xf32> to vector<8x1xf32>
    %45 = vector.extract_strided_slice %35 {offsets = [1, 0], sizes = [1, 128], strides = [1, 1]} : vector<8x128xf32> to vector<1x128xf32>
    %46 = vector.broadcast %44 : vector<8x1xf32> to vector<8x128xf32>
    %47 = vector.broadcast %45 : vector<1x128xf32> to vector<8x128xf32>
    %48 = arith.mulf %46, %47 : vector<8x128xf32>
    %49 = arith.addf %43, %48 : vector<8x128xf32>
    %50 = vector.extract_strided_slice %4 {offsets = [0, 2], sizes = [8, 1], strides = [1, 1]} : vector<8x8xf32> to vector<8x1xf32>
    %51 = vector.extract_strided_slice %35 {offsets = [2, 0], sizes = [1, 128], strides = [1, 1]} : vector<8x128xf32> to vector<1x128xf32>
    %52 = vector.broadcast %50 : vector<8x1xf32> to vector<8x128xf32>
    %53 = vector.broadcast %51 : vector<1x128xf32> to vector<8x128xf32>
    %54 = arith.mulf %52, %53 : vector<8x128xf32>
    %55 = arith.addf %49, %54 : vector<8x128xf32>
    %56 = vector.extract_strided_slice %4 {offsets = [0, 3], sizes = [8, 1], strides = [1, 1]} : vector<8x8xf32> to vector<8x1xf32>
    %57 = vector.extract_strided_slice %35 {offsets = [3, 0], sizes = [1, 128], strides = [1, 1]} : vector<8x128xf32> to vector<1x128xf32>
    %58 = vector.broadcast %56 : vector<8x1xf32> to vector<8x128xf32>
    %59 = vector.broadcast %57 : vector<1x128xf32> to vector<8x128xf32>
    %60 = arith.mulf %58, %59 : vector<8x128xf32>
    %61 = arith.addf %55, %60 : vector<8x128xf32>
    %62 = vector.extract_strided_slice %4 {offsets = [0, 4], sizes = [8, 1], strides = [1, 1]} : vector<8x8xf32> to vector<8x1xf32>
    %63 = vector.extract_strided_slice %35 {offsets = [4, 0], sizes = [1, 128], strides = [1, 1]} : vector<8x128xf32> to vector<1x128xf32>
    %64 = vector.broadcast %62 : vector<8x1xf32> to vector<8x128xf32>
    %65 = vector.broadcast %63 : vector<1x128xf32> to vector<8x128xf32>
    %66 = arith.mulf %64, %65 : vector<8x128xf32>
    %67 = arith.addf %61, %66 : vector<8x128xf32>
    %68 = vector.extract_strided_slice %4 {offsets = [0, 5], sizes = [8, 1], strides = [1, 1]} : vector<8x8xf32> to vector<8x1xf32>
    %69 = vector.extract_strided_slice %35 {offsets = [5, 0], sizes = [1, 128], strides = [1, 1]} : vector<8x128xf32> to vector<1x128xf32>
    %70 = vector.broadcast %68 : vector<8x1xf32> to vector<8x128xf32>
    %71 = vector.broadcast %69 : vector<1x128xf32> to vector<8x128xf32>
    %72 = arith.mulf %70, %71 : vector<8x128xf32>
    %73 = arith.addf %67, %72 : vector<8x128xf32>
    %74 = vector.extract_strided_slice %4 {offsets = [0, 6], sizes = [8, 1], strides = [1, 1]} : vector<8x8xf32> to vector<8x1xf32>
    %75 = vector.extract_strided_slice %35 {offsets = [6, 0], sizes = [1, 128], strides = [1, 1]} : vector<8x128xf32> to vector<1x128xf32>
    %76 = vector.broadcast %74 : vector<8x1xf32> to vector<8x128xf32>
    %77 = vector.broadcast %75 : vector<1x128xf32> to vector<8x128xf32>
    %78 = arith.mulf %76, %77 : vector<8x128xf32>
    %79 = arith.addf %73, %78 : vector<8x128xf32>
    %80 = vector.extract_strided_slice %4 {offsets = [0, 7], sizes = [8, 1], strides = [1, 1]} : vector<8x8xf32> to vector<8x1xf32>
    %81 = vector.extract_strided_slice %35 {offsets = [7, 0], sizes = [1, 128], strides = [1, 1]} : vector<8x128xf32> to vector<1x128xf32>
    %82 = vector.broadcast %80 : vector<8x1xf32> to vector<8x128xf32>
    %83 = vector.broadcast %81 : vector<1x128xf32> to vector<8x128xf32>
    %84 = arith.mulf %82, %83 : vector<8x128xf32>
    %85 = arith.addf %79, %84 : vector<8x128xf32>
    %cst_3 = arith.constant 0.000000e+00 : f32
    %86 = vector.broadcast %cst_3 : f32 to vector<8x128xf32>
    %87 = arith.maximumf %85, %86 : vector<8x128xf32>
    %88 = vector.shape_cast %7 : vector<3x1xf32> to vector<3x1xf32>
    %89 = vector.broadcast %88 : vector<3x1xf32> to vector<3x128xf32>
    %90 = vector.extract_strided_slice %6 {offsets = [0, 0], sizes = [3, 1], strides = [1, 1]} : vector<3x8xf32> to vector<3x1xf32>
    %91 = vector.extract_strided_slice %87 {offsets = [0, 0], sizes = [1, 128], strides = [1, 1]} : vector<8x128xf32> to vector<1x128xf32>
    %92 = vector.broadcast %90 : vector<3x1xf32> to vector<3x128xf32>
    %93 = vector.broadcast %91 : vector<1x128xf32> to vector<3x128xf32>
    %94 = arith.mulf %92, %93 : vector<3x128xf32>
    %95 = arith.addf %89, %94 : vector<3x128xf32>
    %96 = vector.extract_strided_slice %6 {offsets = [0, 1], sizes = [3, 1], strides = [1, 1]} : vector<3x8xf32> to vector<3x1xf32>
    %97 = vector.extract_strided_slice %87 {offsets = [1, 0], sizes = [1, 128], strides = [1, 1]} : vector<8x128xf32> to vector<1x128xf32>
    %98 = vector.broadcast %96 : vector<3x1xf32> to vector<3x128xf32>
    %99 = vector.broadcast %97 : vector<1x128xf32> to vector<3x128xf32>
    %100 = arith.mulf %98, %99 : vector<3x128xf32>
    %101 = arith.addf %95, %100 : vector<3x128xf32>
    %102 = vector.extract_strided_slice %6 {offsets = [0, 2], sizes = [3, 1], strides = [1, 1]} : vector<3x8xf32> to vector<3x1xf32>
    %103 = vector.extract_strided_slice %87 {offsets = [2, 0], sizes = [1, 128], strides = [1, 1]} : vector<8x128xf32> to vector<1x128xf32>
    %104 = vector.broadcast %102 : vector<3x1xf32> to vector<3x128xf32>
    %105 = vector.broadcast %103 : vector<1x128xf32> to vector<3x128xf32>
    %106 = arith.mulf %104, %105 : vector<3x128xf32>
    %107 = arith.addf %101, %106 : vector<3x128xf32>
    %108 = vector.extract_strided_slice %6 {offsets = [0, 3], sizes = [3, 1], strides = [1, 1]} : vector<3x8xf32> to vector<3x1xf32>
    %109 = vector.extract_strided_slice %87 {offsets = [3, 0], sizes = [1, 128], strides = [1, 1]} : vector<8x128xf32> to vector<1x128xf32>
    %110 = vector.broadcast %108 : vector<3x1xf32> to vector<3x128xf32>
    %111 = vector.broadcast %109 : vector<1x128xf32> to vector<3x128xf32>
    %112 = arith.mulf %110, %111 : vector<3x128xf32>
    %113 = arith.addf %107, %112 : vector<3x128xf32>
    %114 = vector.extract_strided_slice %6 {offsets = [0, 4], sizes = [3, 1], strides = [1, 1]} : vector<3x8xf32> to vector<3x1xf32>
    %115 = vector.extract_strided_slice %87 {offsets = [4, 0], sizes = [1, 128], strides = [1, 1]} : vector<8x128xf32> to vector<1x128xf32>
    %116 = vector.broadcast %114 : vector<3x1xf32> to vector<3x128xf32>
    %117 = vector.broadcast %115 : vector<1x128xf32> to vector<3x128xf32>
    %118 = arith.mulf %116, %117 : vector<3x128xf32>
    %119 = arith.addf %113, %118 : vector<3x128xf32>
    %120 = vector.extract_strided_slice %6 {offsets = [0, 5], sizes = [3, 1], strides = [1, 1]} : vector<3x8xf32> to vector<3x1xf32>
    %121 = vector.extract_strided_slice %87 {offsets = [5, 0], sizes = [1, 128], strides = [1, 1]} : vector<8x128xf32> to vector<1x128xf32>
    %122 = vector.broadcast %120 : vector<3x1xf32> to vector<3x128xf32>
    %123 = vector.broadcast %121 : vector<1x128xf32> to vector<3x128xf32>
    %124 = arith.mulf %122, %123 : vector<3x128xf32>
    %125 = arith.addf %119, %124 : vector<3x128xf32>
    %126 = vector.extract_strided_slice %6 {offsets = [0, 6], sizes = [3, 1], strides = [1, 1]} : vector<3x8xf32> to vector<3x1xf32>
    %127 = vector.extract_strided_slice %87 {offsets = [6, 0], sizes = [1, 128], strides = [1, 1]} : vector<8x128xf32> to vector<1x128xf32>
    %128 = vector.broadcast %126 : vector<3x1xf32> to vector<3x128xf32>
    %129 = vector.broadcast %127 : vector<1x128xf32> to vector<3x128xf32>
    %130 = arith.mulf %128, %129 : vector<3x128xf32>
    %131 = arith.addf %125, %130 : vector<3x128xf32>
    %132 = vector.extract_strided_slice %6 {offsets = [0, 7], sizes = [3, 1], strides = [1, 1]} : vector<3x8xf32> to vector<3x1xf32>
    %133 = vector.extract_strided_slice %87 {offsets = [7, 0], sizes = [1, 128], strides = [1, 1]} : vector<8x128xf32> to vector<1x128xf32>
    %134 = vector.broadcast %132 : vector<3x1xf32> to vector<3x128xf32>
    %135 = vector.broadcast %133 : vector<1x128xf32> to vector<3x128xf32>
    %136 = arith.mulf %134, %135 : vector<3x128xf32>
    %137 = arith.addf %131, %136 : vector<3x128xf32>
    %c0_4 = arith.constant 0 : index
    %c0_5 = arith.constant 0 : index
    %138 = vector.load %arg3[%c0_4, %c0_5] : memref<3x128xf32, #tpu.memory_space<vmem>>, vector<3x128xf32>
    tpu.vector_store %arg3[%c0_4, %c0_5], %137 {strides = array<i32>} : memref<3x128xf32, #tpu.memory_space<vmem>>, vector<3x128xf32>,
    return
  }
  func.func @transform_0(%arg0: i32) -> (i32, i32) {
    %c0_i32 = arith.constant 0 : i32
    %c0_i32_0 = arith.constant 0 : i32
    %c0_i32_1 = arith.constant 0 : i32
    return %c0_i32, %c0_i32_0 : i32, i32
  }
  func.func @transform_1(%arg0: i32) -> (i32, i32) {
    %c0_i32 = arith.constant 0 : i32
    %c0_i32_0 = arith.constant 0 : i32
    return %c0_i32, %arg0 : i32, i32
  }
  func.func @transform_2(%arg0: i32) -> (i32, i32) {
    %c0_i32 = arith.constant 0 : i32
    %c0_i32_0 = arith.constant 0 : i32
    return %c0_i32, %arg0 : i32, i32
  }
}

</mosaic_0001>

<llo_original>
// kernel: mlp_forward.1
$region0: #{mlp_forward.1}
  #allocation0 [shape = 'u32[]', space=smem, size = 0x4, offset = 0x4, fixed_abs, tag = 'smem constant byte address 0x4 - core index']
  #allocation1 [shape = 'u32[144,128]{1,0:T(1,128)}', space=vmem, size = 0x12000, scoped, tag = 'internal scratch']
  %s0 = inlined_call_operand.vmem [shape: f32[8,23], index: 0, kind: input, shape index: {}]
  %s1 = inlined_call_operand.vmem [shape: f32[4,128], index: 1, kind: input, shape index: {}]
  %s2 = inlined_call_operand.hbm [shape: f32[3,128], index: 2, kind: output, shape index: {}]
  %s3 = sld [smem:[#allocation0]]
  $region18: #{mlp_forward.1} parent=0
    _
  %s5 = ssub.s32 1, %s3
  %s6 = scalar_select 0, %s5, %s3
  $region1: #{mlp_forward.1} parent=0
    #allocation2 [shape = 'u8[2048]{0}', space=vmem, size = 0x800, scoped, tag = 'output window, operand 0, single buffered']
    #allocation3 [shape = 's32[1]{0}', space=sflag, size = 0x4, scoped, tag = 'scoped memory for mlp_forward.1']
    %7 = vsyncpa [#allocation3], 0
    // Predicated region
    $region2: #{mlp_forward.1} parent=1 // pred_check
      _
    $region3: #{mlp_forward.1} parent=1 // pred_check_branch
      %9 = sbr.rel (0) target = $region5
    $region4: #{mlp_forward.1} parent=1 // pred_region
      _
    $region5: #{mlp_forward.1} parent=1 // pred_fallthru
      _
    // Predicated region
    $region6: #{mlp_forward.1} parent=1 // pred_check
      _
    $region7: #{mlp_forward.1} parent=1 // pred_check_branch
      %11 = sbr.rel (0) target = $region9
    $region8: #{mlp_forward.1} parent=1 // pred_region
      _
    $region9: #{mlp_forward.1} parent=1 // pred_fallthru
      _
    %v12 = vld [vmem:[%s1] sm:$0xf]
    %v13 = vld [vmem:[%s0] sm:$0xff]
    %15 = vset.pattern.permute.xlu0 4
    %16 = vperm.xlu0 %15, %v13
    %v17 = vpop.permute.xlu0 %16
    %19 = vset.pattern.permute.xlu0 0
    %20 = vperm.xlu0 %19, %v13
    %v21 = vpop.permute.xlu0 %20
    %v23 = vlaneseq
    %v24 = vshrl.u32 %v23, 7
    %v25 = vsub.s32 0, %v24
    %v26 = vrot.slane %v12, %v25
    %v27 = vmul.f32 %v21, %v26
    %v28 = vadd.f32 %v17, %v27
    %29 = vset.pattern.permute.xlu0 1
    %30 = vperm.xlu0 %29, %v13
    %v31 = vpop.permute.xlu0 %30
    %v33 = vlaneseq
    %v34 = vshrl.u32 %v33, 7
    %v35 = vsub.s32 1, %v34
    %v36 = vrot.slane %v12, %v35
    %v37 = vmul.f32 %v31, %v36
    %v38 = vadd.f32 %v28, %v37
    %39 = vset.pattern.permute.xlu0 2
    %40 = vperm.xlu0 %39, %v13
    %v41 = vpop.permute.xlu0 %40
    %v43 = vlaneseq
    %v44 = vshrl.u32 %v43, 7
    %v45 = vsub.s32 2, %v44
    %v46 = vrot.slane %v12, %v45
    %v47 = vmul.f32 %v41, %v46
    %v48 = vadd.f32 %v38, %v47
    %49 = vset.pattern.permute.xlu0 3
    %50 = vperm.xlu0 %49, %v13
    %v51 = vpop.permute.xlu0 %50
    %v53 = vlaneseq
    %v54 = vshrl.u32 %v53, 7
    %v55 = vsub.s32 3, %v54
    %v56 = vrot.slane %v12, %v55
    %v57 = vmul.f32 %v51, %v56
    %v58 = vadd.f32 %v48, %v57
    %v59 = vmax.f32 %v58, 0.0
    %60 = vset.pattern.permute.xlu0 13
    %61 = vperm.xlu0 %60, %v13
    %v62 = vpop.permute.xlu0 %61
    %64 = vset.pattern.permute.xlu0 5
    %65 = vperm.xlu0 %64, %v13
    %v66 = vpop.permute.xlu0 %65
    %v68 = vlaneseq
    %v69 = vshrl.u32 %v68, 7
    %v70 = vsub.s32 0, %v69
    %v71 = vrot.slane %v59, %v70
    %v72 = vmul.f32 %v66, %v71
    %v73 = vadd.f32 %v62, %v72
    %74 = vset.pattern.permute.xlu0 6
    %75 = vperm.xlu0 %74, %v13
    %v76 = vpop.permute.xlu0 %75
    %v78 = vlaneseq
    %v79 = vshrl.u32 %v78, 7
    %v80 = vsub.s32 1, %v79
    %v81 = vrot.slane %v59, %v80
    %v82 = vmul.f32 %v76, %v81
    %v83 = vadd.f32 %v73, %v82
    %84 = vset.pattern.permute.xlu0 7
    %85 = vperm.xlu0 %84, %v13
    %v86 = vpop.permute.xlu0 %85
    %v88 = vlaneseq
    %v89 = vshrl.u32 %v88, 7
    %v90 = vsub.s32 2, %v89
    %v91 = vrot.slane %v59, %v90
    %v92 = vmul.f32 %v86, %v91
    %v93 = vadd.f32 %v83, %v92
    %94 = vset.pattern.permute.xlu0 8
    %95 = vperm.xlu0 %94, %v13
    %v96 = vpop.permute.xlu0 %95
    %v98 = vlaneseq
    %v99 = vshrl.u32 %v98, 7
    %v100 = vsub.s32 3, %v99
    %v101 = vrot.slane %v59, %v100
    %v102 = vmul.f32 %v96, %v101
    %v103 = vadd.f32 %v93, %v102
    %104 = vset.pattern.permute.xlu0 9
    %105 = vperm.xlu0 %104, %v13
    %v106 = vpop.permute.xlu0 %105
    %v108 = vlaneseq
    %v109 = vshrl.u32 %v108, 7
    %v110 = vsub.s32 4, %v109
    %v111 = vrot.slane %v59, %v110
    %v112 = vmul.f32 %v106, %v111
    %v113 = vadd.f32 %v103, %v112
    %114 = vset.pattern.permute.xlu0 10
    %115 = vperm.xlu0 %114, %v13
    %v116 = vpop.permute.xlu0 %115
    %v118 = vlaneseq
    %v119 = vshrl.u32 %v118, 7
    %v120 = vsub.s32 5, %v119
    %v121 = vrot.slane %v59, %v120
    %v122 = vmul.f32 %v116, %v121
    %v123 = vadd.f32 %v113, %v122
    %124 = vset.pattern.permute.xlu0 11
    %125 = vperm.xlu0 %124, %v13
    %v126 = vpop.permute.xlu0 %125
    %v128 = vlaneseq
    %v129 = vshrl.u32 %v128, 7
    %v130 = vsub.s32 6, %v129
    %v131 = vrot.slane %v59, %v130
    %v132 = vmul.f32 %v126, %v131
    %v133 = vadd.f32 %v123, %v132
    %134 = vset.pattern.permute.xlu0 12
    %135 = vperm.xlu0 %134, %v13
    %v136 = vpop.permute.xlu0 %135
    %v138 = vlaneseq
    %v139 = vshrl.u32 %v138, 7
    %v140 = vsub.s32 7, %v139
    %v141 = vrot.slane %v59, %v140
    %v142 = vmul.f32 %v136, %v141
    %v143 = vadd.f32 %v133, %v142
    %v144 = vmax.f32 %v143, 0.0
    %145 = vset.pattern.permute.xlu0 22
    %146 = vperm.xlu0 %145, %v13
    %v147 = vpop.permute.xlu0 %146
    %149 = vset.pattern.permute.xlu0 14
    %150 = vperm.xlu0 %149, %v13
    %v151 = vpop.permute.xlu0 %150
    %v153 = vlaneseq
    %v154 = vshrl.u32 %v153, 7
    %v155 = vsub.s32 0, %v154
    %v156 = vrot.slane %v144, %v155
    %v157 = vmul.f32 %v151, %v156
    %v158 = vadd.f32 %v147, %v157
    %159 = vset.pattern.permute.xlu0 15
    %160 = vperm.xlu0 %159, %v13
    %v161 = vpop.permute.xlu0 %160
    %v163 = vlaneseq
    %v164 = vshrl.u32 %v163, 7
    %v165 = vsub.s32 1, %v164
    %v166 = vrot.slane %v144, %v165
    %v167 = vmul.f32 %v161, %v166
    %v168 = vadd.f32 %v158, %v167
    %169 = vset.pattern.permute.xlu0 16
    %170 = vperm.xlu0 %169, %v13
    %v171 = vpop.permute.xlu0 %170
    %v173 = vlaneseq
    %v174 = vshrl.u32 %v173, 7
    %v175 = vsub.s32 2, %v174
    %v176 = vrot.slane %v144, %v175
    %v177 = vmul.f32 %v171, %v176
    %v178 = vadd.f32 %v168, %v177
    %179 = vset.pattern.permute.xlu0 17
    %180 = vperm.xlu0 %179, %v13
    %v181 = vpop.permute.xlu0 %180
    %v183 = vlaneseq
    %v184 = vshrl.u32 %v183, 7
    %v185 = vsub.s32 3, %v184
    %v186 = vrot.slane %v144, %v185
    %v187 = vmul.f32 %v181, %v186
    %v188 = vadd.f32 %v178, %v187
    %189 = vset.pattern.permute.xlu0 18
    %190 = vperm.xlu0 %189, %v13
    %v191 = vpop.permute.xlu0 %190
    %v193 = vlaneseq
    %v194 = vshrl.u32 %v193, 7
    %v195 = vsub.s32 4, %v194
    %v196 = vrot.slane %v144, %v195
    %v197 = vmul.f32 %v191, %v196
    %v198 = vadd.f32 %v188, %v197
    %199 = vset.pattern.permute.xlu0 19
    %200 = vperm.xlu0 %199, %v13
    %v201 = vpop.permute.xlu0 %200
    %v203 = vlaneseq
    %v204 = vshrl.u32 %v203, 7
    %v205 = vsub.s32 5, %v204
    %v206 = vrot.slane %v144, %v205
    %v207 = vmul.f32 %v201, %v206
    %v208 = vadd.f32 %v198, %v207
    %209 = vset.pattern.permute.xlu0 20
    %210 = vperm.xlu0 %209, %v13
    %v211 = vpop.permute.xlu0 %210
    %v213 = vlaneseq
    %v214 = vshrl.u32 %v213, 7
    %v215 = vsub.s32 6, %v214
    %v216 = vrot.slane %v144, %v215
    %v217 = vmul.f32 %v211, %v216
    %v218 = vadd.f32 %v208, %v217
    %219 = vset.pattern.permute.xlu0 21
    %220 = vperm.xlu0 %219, %v13
    %v221 = vpop.permute.xlu0 %220
    %v223 = vlaneseq
    %v224 = vshrl.u32 %v223, 7
    %v225 = vsub.s32 7, %v224
    %v226 = vrot.slane %v144, %v225
    %v227 = vmul.f32 %v221, %v226
    %v228 = vadd.f32 %v218, %v227
    %229 = vst [vmem:[#allocation2] sm:$0x7] %v228
    // Predicated region
    $region10: #{mlp_forward.1} parent=1 // pred_check
      _
    $region11: #{mlp_forward.1} parent=1 // pred_check_branch
      %231 = sbr.rel (0) target = $region13
    $region12: #{mlp_forward.1} parent=1 // pred_region
      %s233 = ssub.s32 64, 64
      %234 = vsyncadd [#allocation3], %s233
      %s236 = sshll.u32 [#allocation2], 4
      %s237 = int_to_ptr.vmem [resolvable:$true] %s236
      %239 = dma.vmem_to_hbm [thread:$0]  %s237, 64, %s2, [#allocation3]
    $region13: #{mlp_forward.1} parent=1 // pred_fallthru
      _
    // Predicated region
    $region14: #{mlp_forward.1} parent=1 // pred_check
      _
    $region15: #{mlp_forward.1} parent=1 // pred_check_branch
      %241 = sbr.rel (0) target = $region17
    $region16: #{mlp_forward.1} parent=1 // pred_region
      %242 = dma.done [#allocation3], 64
    $region17: #{mlp_forward.1} parent=1 // pred_fallthru
      _
    %243 = vsyncpa [#allocation3], 1

</llo_original>
